<compile_context>
chip_gen: v7x
topology: tpu7x:2x2x1
jax: 0.10.0
libtpu: 0.0.40
codegen_flags: <defaults>
</compile_context>

<pallas_src>
import functools

import jax
import jax.numpy as jnp
import numpy as np
from jax.experimental import pallas as pl
from jax.experimental.pallas import tpu as pltpu


def _round_up(x, m):
    return ((x + m - 1) // m) * m


def _mme_kernel(logits_ref, logw_ref, tgt_ref, out_ref, *, tb, batch):
    # logits_ref: (EB, TB, C) input dtype; logw_ref: (EB, 1, C) f32
    # tgt_ref:    (TB, 1) int32;           out_ref: (1, 1, 8, 128) f32
    eb, _, c = logits_ref.shape
    t = pl.program_id(1)

    # Balanced logits for this (expert-block, batch-tile).
    z = logits_ref[...].astype(jnp.float32) + logw_ref[...]          # (EB, TB, C)

    # Single logsumexp pass (log_softmax + cross_entropy collapse to this).
    m1 = jnp.max(z, axis=-1, keepdims=True)                          # (EB, TB, 1)
    lse = jnp.log(jnp.sum(jnp.exp(z - m1), axis=-1, keepdims=True)) + m1

    # Gather z[b, t_b] via a fused select-reduce (no one-hot materialization).
    tgt = tgt_ref[...].reshape(1, tb, 1)                             # (1, TB, 1)
    cls = jax.lax.broadcasted_iota(jnp.int32, (1, tb, c), 2)         # (1, TB, C)
    picked = jnp.sum(jnp.where(cls == tgt, z, 0.0), axis=-1, keepdims=True)

    # Mask ragged batch-tail rows with a SELECT (multiply would propagate
    # NaN/Inf from garbage out-of-bounds rows of the ragged last tile).
    row = jax.lax.broadcasted_iota(jnp.int32, (1, tb, 1), 1) + t * tb
    per_sample = jnp.where(row < batch, lse - picked, 0.0)           # (EB, TB, 1)

    # Lane-dense unmasked store of this tile's partial sum (distinct block per
    # grid step -> both grid axes can be "parallel").
    out_ref[...] = jnp.full(out_ref.shape, jnp.sum(per_sample), dtype=out_ref.dtype)


def _vmem_budget():
    """Generation-aware scoped-VMEM limit and per-step working-set budget."""
    try:
        cap = int(pltpu.get_tpu_info().vmem_capacity_bytes)   # per-core VMEM
    except Exception:
        cap = 64 * 1024 * 1024                                # safe on all gens
    limit = min(max(cap - 16 * 1024 * 1024, 32 * 1024 * 1024), 100 * 1024 * 1024)
    budget = int(limit * 0.6)   # headroom for f32 temps / internal scratch
    return limit, budget


def _pick_tiles(E, B, C, itemsize, budget):
    """Choose (EB, TB, sublane_multiple) for grid = (E//EB, cdiv(B, TB))."""
    sub = {1: 32, 2: 16, 4: 8}.get(itemsize, 8)     # dtype-native sublane mult
    Cl = _round_up(C, 128)                          # lane footprint per row
    # Double-buffered input tile + ~4 full-tile f32 temporaries (z, exp, where,
    # select-reduce) per (expert, row).
    per_row = Cl * (2 * itemsize + 4 * 4)
    b_sub = _round_up(B, sub)
    tb_cap = min(b_sub, 1024)                       # 512-1024 row sweet spot
    floor = min(256, b_sub)

    fallback = None
    for EB in [d for d in range(E, 0, -1) if E % d == 0]:   # prefer large EB
        TB = (budget // (EB * per_row)) // sub * sub
        TB = min(TB, tb_cap)
        if TB >= floor:
            return EB, TB, sub
        if fallback is None and TB >= sub:
            fallback = (EB, TB, sub)
    if fallback is not None:
        return fallback
    return 1, sub, sub


def mme_loss(experts_logits, targets, log_prior, lambda_values):
    """experts_logits: [E, B, C] (f32 or bf16), targets: [B] int -> scalar f32."""
    E, B, C = experts_logits.shape
    itemsize = jnp.dtype(experts_logits.dtype).itemsize

    vmem_limit, budget = _vmem_budget()
    EB, TB, sub = _pick_tiles(E, B, C, itemsize, budget)

    GE = E // EB
    NT = pl.cdiv(B, TB)

    # With a single-step grid and 'parallel' semantics, v7x's second TC would
    # idle; split the batch in two when possible (negligible cost elsewhere).
    if GE * NT == 1 and _round_up(B, sub) >= 2 * sub:
        TB = _round_up(_round_up(B, sub) // 2, sub)
        NT = pl.cdiv(B, TB)

    # Per-expert class weights: lambda_e * log_prior (tiny, f32).
    lambdas = jnp.asarray(lambda_values, dtype=jnp.float32)             # (E,)
    log_weight = (lambdas[:, None] *
                  log_prior.astype(jnp.float32)[None, :]).reshape(E, 1, C)

    # Targets as a (NT*TB, 1) int32 column (tiny pad; the big logits array is
    # passed to the kernel UNPADDED -- ragged tail handled in-kernel).
    B_pad = NT * TB
    tgt2d = jnp.pad(targets.astype(jnp.int32), (0, B_pad - B)).reshape(B_pad, 1)

    kernel = functools.partial(_mme_kernel, tb=TB, batch=B)

    cost = pl.CostEstimate(
        flops=6 * E * B * C,
        transcendentals=E * B * C,
        bytes_accessed=int(E * B * C * itemsize + E * C * 4 + B_pad * 4
                           + GE * NT * 8 * 128 * 4),
    )

    # NOTE: keep the expert axis as the OUTER grid dim -- the log_weight block
    # index (e, 0, 0) is constant across the inner batch axis, so Pallas does
    # not re-DMA the (EB, 1, C) prior block between batch steps.
    partials = pl.pallas_call(
        kernel,
        out_shape=jax.ShapeDtypeStruct((GE, NT, 8, 128), jnp.float32),
        grid_spec=pltpu.PrefetchScalarGridSpec(
            num_scalar_prefetch=0,
            grid=(GE, NT),
            in_specs=[
                pl.BlockSpec((EB, TB, C), lambda e, t: (e, t, 0)),   # logits tile
                pl.BlockSpec((EB, 1, C), lambda e, t: (e, 0, 0)),    # lambda_e*log_prior
                pl.BlockSpec((TB, 1), lambda e, t: (t, 0)),          # targets tile
            ],
            out_specs=pl.BlockSpec((1, 1, 8, 128), lambda e, t: (e, t, 0, 0)),
        ),
        compiler_params=pltpu.CompilerParams(
            dimension_semantics=("parallel", "parallel"),
            vmem_limit_bytes=int(vmem_limit),
        ),
        cost_estimate=cost,
    )(experts_logits, log_weight, tgt2d)

    # Final reduction: mean over batch per expert, mean over experts.
    return jnp.sum(partials[:, :, 0, 0]) / jnp.float32(E * B)


def mme_loss_ref(experts_logits, targets, log_prior, lambda_values):
    """Pure-JAX reference mirroring the PyTorch forward (test=False)."""
    E, B, C = experts_logits.shape
    loss = 0.0
    for i in range(E):
        z = experts_logits[i].astype(jnp.float32) + lambda_values[i] * log_prior[None, :]
        ls = jax.nn.log_softmax(z, axis=1)
        # F.cross_entropy on ls with integer targets (re-applies log_softmax):
        lse2 = jax.nn.logsumexp(ls, axis=1)
        picked = jnp.take_along_axis(ls, targets[:, None].astype(jnp.int32), axis=1)[:, 0]
        loss = loss + jnp.mean(-picked + lse2)
    return loss / E


if __name__ == "__main__":
    key = jax.random.PRNGKey(0)

    num_experts = 3
    batch = 8
    num_classes = 32

    # Deterministic synthetic long-tailed class-count list.
    cls_num_list = np.array([1000.0 / (k + 1) for k in range(num_classes)],
                            dtype=np.float64)
    log_prior_np = np.log(cls_num_list / np.sum(cls_num_list) + 1e-12)
    log_prior = jnp.asarray(log_prior_np, dtype=jnp.float32)

    lambda_values = [-0.5, 0.0, 1.5]  # num_experts == 3 branch of the module

    k1, k2 = jax.random.split(key)
    experts_logits = jax.random.normal(
        k1, (num_experts, batch, num_classes), dtype=jnp.float32)
    targets = jax.random.randint(k2, (batch,), 0, num_classes, dtype=jnp.int32)

    loss = mme_loss(experts_logits, targets, log_prior, lambda_values)
    loss = jax.block_until_ready(loss)

    ref = jax.block_until_ready(
        mme_loss_ref(experts_logits, targets, log_prior, lambda_values))
    assert jnp.allclose(loss, ref, rtol=1e-5, atol=1e-5), (loss, ref)

    print("KERNEL_OK")
</pallas_src>

<mosaic_0001>
module attributes {stable_mosaic.version = 11 : i64} {
  func.func @_mme_kernel(%arg0: i32, %arg1: i32, %arg2: memref<3x8x32xf32, #tpu.memory_space<vmem>>, %arg3: memref<3x1x32xf32, #tpu.memory_space<vmem>>, %arg4: memref<8x1xi32, #tpu.memory_space<vmem>>, %arg5: memref<1x1x8x128xf32, #tpu.memory_space<vmem>>) attributes {dimension_semantics = [#tpu.dimension_semantics<parallel>, #tpu.dimension_semantics<parallel>], iteration_bounds = array<i64: 1, 1>, scalar_prefetch = 0 : i64, scratch_operands = 0 : i64, tpu.core_type = #tpu.core_type<tc>, window_params = [{transform_indices = @transform_0, window_bounds = array<i64: 3, 8, 32>}, {transform_indices = @transform_1, window_bounds = array<i64: 3, 1, 32>}, {transform_indices = @transform_2, window_bounds = array<i64: 8, 1>}, {transform_indices = @transform_3, window_bounds = array<i64: 1, 1, 8, 128>}]} {
    %c0 = arith.constant 0 : index
    %c0_0 = arith.constant 0 : index
    %c0_1 = arith.constant 0 : index
    %0 = vector.load %arg2[%c0, %c0_0, %c0_1] : memref<3x8x32xf32, #tpu.memory_space<vmem>>, vector<3x8x32xf32>
    %c0_2 = arith.constant 0 : index
    %c0_3 = arith.constant 0 : index
    %c0_4 = arith.constant 0 : index
    %1 = vector.load %arg3[%c0_2, %c0_3, %c0_4] : memref<3x1x32xf32, #tpu.memory_space<vmem>>, vector<3x1x32xf32>
    %2 = vector.broadcast %1 : vector<3x1x32xf32> to vector<3x8x32xf32>
    %3 = arith.addf %0, %2 : vector<3x8x32xf32>
    %cst = arith.constant dense<0xFF800000> : vector<3x8xf32>
    %4 = vector.multi_reduction <maximumf>, %3, %cst [2] : vector<3x8x32xf32> to vector<3x8xf32>
    %5 = vector.shape_cast %4 : vector<3x8xf32> to vector<3x8x1xf32>
    %6 = vector.broadcast %5 : vector<3x8x1xf32> to vector<3x8x32xf32>
    %7 = arith.subf %3, %6 : vector<3x8x32xf32>
    %8 = math.exp %7 : vector<3x8x32xf32>
    %cst_5 = arith.constant dense<0.000000e+00> : vector<3x8xf32>
    %9 = vector.multi_reduction <add>, %8, %cst_5 [2] : vector<3x8x32xf32> to vector<3x8xf32>
    %10 = vector.shape_cast %9 : vector<3x8xf32> to vector<3x8x1xf32>
    %11 = math.log %10 : vector<3x8x1xf32>
    %12 = arith.addf %11, %5 : vector<3x8x1xf32>
    %c0_6 = arith.constant 0 : index
    %c0_7 = arith.constant 0 : index
    %13 = vector.load %arg4[%c0_6, %c0_7] : memref<8x1xi32, #tpu.memory_space<vmem>>, vector<8x1xi32>
    %14 = vector.shape_cast %13 : vector<8x1xi32> to vector<1x8x1xi32>
    %15 = tpu.iota {dimensions = array<i32: 2>} : vector<1x8x32xi32>
    %16 = vector.broadcast %14 : vector<1x8x1xi32> to vector<1x8x32xi32>
    %17 = arith.cmpi eq, %15, %16 : vector<1x8x32xi32>
    %cst_8 = arith.constant 0.000000e+00 : f32
    %18 = vector.shape_cast %17 : vector<1x8x32xi1> to vector<1x8x32xi1>
    %19 = vector.broadcast %18 : vector<1x8x32xi1> to vector<3x8x32xi1>
    %20 = vector.broadcast %cst_8 : f32 to vector<3x8x32xf32>
    %21 = arith.select %19, %3, %20 : vector<3x8x32xi1>, vector<3x8x32xf32>
    %cst_9 = arith.constant dense<0.000000e+00> : vector<3x8xf32>
    %22 = vector.multi_reduction <add>, %21, %cst_9 [2] : vector<3x8x32xf32> to vector<3x8xf32>
    %23 = vector.shape_cast %22 : vector<3x8xf32> to vector<3x8x1xf32>
    %24 = tpu.iota {dimensions = array<i32: 1>} : vector<1x8x1xi32>
    %c8_i32 = arith.constant 8 : i32
    %25 = arith.muli %arg1, %c8_i32 : i32
    %26 = vector.broadcast %25 : i32 to vector<1x8x1xi32>
    %27 = arith.addi %24, %26 : vector<1x8x1xi32>
    %c8_i32_10 = arith.constant 8 : i32
    %28 = vector.broadcast %c8_i32_10 : i32 to vector<1x8x1xi32>
    %29 = arith.cmpi slt, %27, %28 : vector<1x8x1xi32>
    %30 = arith.subf %12, %23 : vector<3x8x1xf32>
    %cst_11 = arith.constant 0.000000e+00 : f32
    %31 = vector.shape_cast %29 : vector<1x8x1xi1> to vector<1x8x1xi1>
    %32 = vector.broadcast %31 : vector<1x8x1xi1> to vector<3x8x1xi1>
    %33 = vector.broadcast %cst_11 : f32 to vector<3x8x1xf32>
    %34 = arith.select %32, %30, %33 : vector<3x8x1xi1>, vector<3x8x1xf32>
    %35 = vector.shape_cast %34 : vector<3x8x1xf32> to vector<1x3x8x1xf32>
    %cst_12 = arith.constant dense<0.000000e+00> : vector<1xf32>
    %36 = vector.multi_reduction <add>, %35, %cst_12 [1, 2, 3] : vector<1x3x8x1xf32> to vector<1xf32>
    %37 = vector.shape_cast %36 : vector<1xf32> to vector<1x1x1x1xf32>
    %38 = vector.extract %37[0, 0, 0, 0] : f32 from vector<1x1x1x1xf32>
    %39 = vector.broadcast %38 : f32 to vector<1x1x8x128xf32>
    %c0_13 = arith.constant 0 : index
    %c0_14 = arith.constant 0 : index
    %c0_15 = arith.constant 0 : index
    %c0_16 = arith.constant 0 : index
    %40 = vector.load %arg5[%c0_13, %c0_14, %c0_15, %c0_16] : memref<1x1x8x128xf32, #tpu.memory_space<vmem>>, vector<1x1x8x128xf32>
    tpu.vector_store %arg5[%c0_13, %c0_14, %c0_15, %c0_16], %39 {strides = array<i32>} : memref<1x1x8x128xf32, #tpu.memory_space<vmem>>, vector<1x1x8x128xf32>,
    return
  }
  func.func @transform_0(%arg0: i32, %arg1: i32) -> (i32, i32, i32) {
    %c0_i32 = arith.constant 0 : i32
    %c0_i32_0 = arith.constant 0 : i32
    return %arg0, %arg1, %c0_i32 : i32, i32, i32
  }
  func.func @transform_1(%arg0: i32, %arg1: i32) -> (i32, i32, i32) {
    %c0_i32 = arith.constant 0 : i32
    %c0_i32_0 = arith.constant 0 : i32
    %c0_i32_1 = arith.constant 0 : i32
    return %arg0, %c0_i32, %c0_i32_0 : i32, i32, i32
  }
  func.func @transform_2(%arg0: i32, %arg1: i32) -> (i32, i32) {
    %c0_i32 = arith.constant 0 : i32
    %c0_i32_0 = arith.constant 0 : i32
    return %arg1, %c0_i32 : i32, i32
  }
  func.func @transform_3(%arg0: i32, %arg1: i32) -> (i32, i32, i32, i32) {
    %c0_i32 = arith.constant 0 : i32
    %c0_i32_0 = arith.constant 0 : i32
    %c0_i32_1 = arith.constant 0 : i32
    return %arg0, %arg1, %c0_i32, %c0_i32_0 : i32, i32, i32, i32
  }
}

</mosaic_0001>

<llo_original>
// kernel: tpu_custom_call.1
$region0: #{tpu_custom_call.1}
  #allocation0 [shape = 'u32[]', space=smem, size = 0x4, offset = 0x4, fixed_abs, tag = 'smem constant byte address 0x4 - core index']
  #allocation1 [shape = 'u32[144,128]{1,0:T(1,128)}', space=vmem, size = 0x12000, scoped, tag = 'internal scratch']
  %s0 = inlined_call_operand.hbm [shape: f32[3,8,32], index: 0, kind: input, shape index: {}]
  %s1 = inlined_call_operand.vmem [shape: f32[3,1,32], index: 1, kind: input, shape index: {}]
  %s2 = inlined_call_operand.vmem [shape: s32[8,1], index: 2, kind: input, shape index: {}]
  %s3 = inlined_call_operand.hbm [shape: f32[1,1,8,128], index: 3, kind: output, shape index: {}]
  %s4 = sld [smem:[#allocation0]]
  $region26: #{tpu_custom_call.1} parent=0
    _
  %s6 = ssub.s32 1, %s4
  %s7 = scalar_select 0, %s6, %s4
  $region1: #{tpu_custom_call.1} parent=0
    #allocation2 [shape = 'u8[12288]{0}', space=vmem, size = 0x3000, scoped, tag = 'input window, operand 0, single buffered']
    #allocation3 [shape = 's32[1]{0}', space=sflag, size = 0x4, scoped, tag = 'scoped memory for tpu_custom_call.1']
    #allocation4 [shape = 's32[1]{0}', space=sflag, size = 0x4, scoped, tag = 'scoped memory for tpu_custom_call.1']
    #allocation5 [shape = 'u8[4096]{0}', space=vmem, size = 0x1000, scoped, tag = 'output window, operand 0, single buffered']
    %8 = vsyncpa [#allocation3], 0
    %9 = vsyncpa [#allocation4], 0
    // Predicated region
    $region2: #{tpu_custom_call.1} parent=1 // pred_check
      _
    $region3: #{tpu_custom_call.1} parent=1 // pred_check_branch
      %11 = sbr.rel (0) target = $region5
    $region4: #{tpu_custom_call.1} parent=1 // pred_region
      %s13 = ssub.s32 384, 384
      %14 = vsyncadd [#allocation3], %s13
      %s15 = sshll.u32 [#allocation2], 4
      %s16 = int_to_ptr.vmem [resolvable:$true] %s15
      %21 = dma.hbm_to_vmem [thread:$0]  %s0, 384, %s16, [#allocation3], 128, 128, 8
    $region5: #{tpu_custom_call.1} parent=1 // pred_fallthru
      _
    // Predicated region
    $region6: #{tpu_custom_call.1} parent=1 // pred_check
      _
    $region7: #{tpu_custom_call.1} parent=1 // pred_check_branch
      %23 = sbr.rel (0) target = $region9
    $region8: #{tpu_custom_call.1} parent=1 // pred_region
      _
    $region9: #{tpu_custom_call.1} parent=1 // pred_fallthru
      _
    // Predicated region
    $region10: #{tpu_custom_call.1} parent=1 // pred_check
      _
    $region11: #{tpu_custom_call.1} parent=1 // pred_check_branch
      %25 = sbr.rel (0) target = $region13
    $region12: #{tpu_custom_call.1} parent=1 // pred_region
      _
    $region13: #{tpu_custom_call.1} parent=1 // pred_fallthru
      _
    // Predicated region
    $region14: #{tpu_custom_call.1} parent=1 // pred_check
      _
    $region15: #{tpu_custom_call.1} parent=1 // pred_check_branch
      %27 = sbr.rel (0) target = $region17
    $region16: #{tpu_custom_call.1} parent=1 // pred_region
      %28 = dma.done [#allocation3], 384
    $region17: #{tpu_custom_call.1} parent=1 // pred_fallthru
      _
    %v29 = vld [vmem:[#allocation2] sm:$0xff]
    %v30 = vld [vmem:[#allocation2 + $0x8] sm:$0xff]
    %v31 = vld [vmem:[#allocation2 + $0x10] sm:$0xff]
    %v32 = vld [vmem:[%s1] sm:$0x1]
    %v33 = vld [vmem:[%s1 + $0x1] sm:$0x1]
    %v34 = vld [vmem:[%s1 + $0x2] sm:$0x1]
    %v38 = vlaneseq
    %v39 = vshrl.u32 %v38, 7
    %v40 = vsub.s32 0, %v39
    %v41 = vrot.slane %v32, %v40
    %v42 = vlaneseq
    %v43 = vshrl.u32 %v42, 7
    %v44 = vsub.s32 0, %v43
    %v45 = vrot.slane %v33, %v44
    %v46 = vlaneseq
    %v47 = vshrl.u32 %v46, 7
    %v48 = vsub.s32 0, %v47
    %v49 = vrot.slane %v34, %v48
    %v53 = vadd.f32 %v29, %v41
    %v54 = vadd.f32 %v30, %v45
    %v55 = vadd.f32 %v31, %v49
    %vm56 = vcmask 261120
    %v57 = vsel %vm56, %v53, -inf
    %58 = vmax.xlane.f32.xlu0 %v57
    %v59 = vpop.xlane.xlu0 %58
    %v60 = vsel %vm56, %v54, -inf
    %61 = vmax.xlane.f32.xlu0 %v60
    %v62 = vpop.xlane.xlu0 %61
    %v63 = vsel %vm56, %v55, -inf
    %64 = vmax.xlane.f32.xlu0 %v63
    %v65 = vpop.xlane.xlu0 %64
    %v66 = vsub.f32 %v53, %v59
    %v67 = vsub.f32 %v54, %v62
    %v68 = vsub.f32 %v55, %v65
    %v69 = vmul.f32 %v66, 1.442695
    %v70 = vpow.pop %v69
    %v71 = vmul.f32 %v67, 1.442695
    %v72 = vpow.pop %v71
    %v73 = vmul.f32 %v68, 1.442695
    %v74 = vpow.pop %v73
    %v75 = vsel %vm56, %v70, 0.0
    %76 = vadd.xlane.f32.xlu0 %v75
    %v77 = vpop.xlane.xlu0 %76
    %v78 = vsel %vm56, %v72, 0.0
    %79 = vadd.xlane.f32.xlu0 %v78
    %v80 = vpop.xlane.xlu0 %79
    %v81 = vsel %vm56, %v74, 0.0
    %82 = vadd.xlane.f32.xlu0 %v81
    %v83 = vpop.xlane.xlu0 %82
    %v84 = vlog2.pop %v77
    %v85 = vmul.f32 %v84, 0.6931472
    %v86 = vlog2.pop %v80
    %v87 = vmul.f32 %v86, 0.6931472
    %v88 = vlog2.pop %v83
    %v89 = vmul.f32 %v88, 0.6931472
    %v90 = vadd.f32 %v85, %v59
    %v91 = vadd.f32 %v87, %v62
    %v92 = vadd.f32 %v89, %v65
    %v93 = vld [vmem:[%s2] sm:$0xff]
    %v94 = vlaneseq
    %v95 = vand.u32 %v94, 127
    %96 = vset.pattern.permute.xlu0 0
    %97 = vperm.xlu0 %96, %v93
    %v98 = vpop.permute.xlu0 %97
    %vm99 = vcmp.eq.s32.totalorder %v95, %v98
    %v100 = vsel %vm99, 1, 0
    %vm101 = vcmp.eq.s32.totalorder %v100, 1
    %v102 = vsel %vm101, %v53, 0.0
    %v103 = vsel %vm101, %v54, 0.0
    %v104 = vsel %vm101, %v55, 0.0
    %v105 = vsel %vm56, %v102, 0.0
    %106 = vadd.xlane.f32.xlu0 %v105
    %v107 = vpop.xlane.xlu0 %106
    %v108 = vsel %vm56, %v103, 0.0
    %109 = vadd.xlane.f32.xlu0 %v108
    %v110 = vpop.xlane.xlu0 %109
    %v111 = vsel %vm56, %v104, 0.0
    %112 = vadd.xlane.f32.xlu0 %v111
    %v113 = vpop.xlane.xlu0 %112
    %v114 = vlaneseq
    %v115 = vshrl.u32 %v114, 7
    %s116 = smul.u32 0, 8
    %v117 = vstv %s116
    %v118 = vadd.s32 %v115, %v117
    %vm119 = vcmp.lt.s32.totalorder %v118, 8
    %v120 = vsub.f32 %v90, %v107
    %v121 = vsub.f32 %v91, %v110
    %v122 = vsub.f32 %v92, %v113
    %v123 = vsel %vm119, 1, 0
    %vm124 = vcmp.eq.s32.totalorder %v123, 1
    %v125 = vsel %vm124, %v120, 0.0
    %v126 = vsel %vm124, %v121, 0.0
    %v127 = vsel %vm124, %v122, 0.0
    %vm128 = vcmask 7168
    %v129 = vsel %vm128, %v125, 0.0
    %v130 = vsel %vm128, %v126, 0.0
    %v131 = vadd.f32 %v129, %v130
    %v132 = vsel %vm128, %v127, 0.0
    %v133 = vadd.f32 %v131, %v132
    %134 = vadd.xlane.f32.xlu0 %v133
    %v135 = vpop.xlane.xlu0 %134
    %v136 = vrot.slane %v135, 4
    %v137 = vadd.f32 %v135, %v136
    %v138 = vrot.slane %v137, 2
    %v139 = vadd.f32 %v137, %v138
    %v140 = vrot.slane %v139, 1
    %v141 = vadd.f32 %v139, %v140
    %s142 = vtos %v141
    %v143 = vstv %s142
    %144 = vst [vmem:[#allocation5] sm:$0xff] %v143
    // Predicated region
    $region18: #{tpu_custom_call.1} parent=1 // pred_check
      _
    $region19: #{tpu_custom_call.1} parent=1 // pred_check_branch
      %146 = sbr.rel (0) target = $region21
    $region20: #{tpu_custom_call.1} parent=1 // pred_region
      %s148 = ssub.s32 128, 128
      %149 = vsyncadd [#allocation4], %s148
      %s151 = sshll.u32 [#allocation5], 4
      %s152 = int_to_ptr.vmem [resolvable:$true] %s151
      %154 = dma.vmem_to_hbm [thread:$0]  %s152, 128, %s3, [#allocation4]
    $region21: #{tpu_custom_call.1} parent=1 // pred_fallthru
      _
    // Predicated region
    $region22: #{tpu_custom_call.1} parent=1 // pred_check
      _
    $region23: #{tpu_custom_call.1} parent=1 // pred_check_branch
      %156 = sbr.rel (0) target = $region25
    $region24: #{tpu_custom_call.1} parent=1 // pred_region
      %157 = dma.done [#allocation4], 128
    $region25: #{tpu_custom_call.1} parent=1 // pred_fallthru
      _
    %158 = vsyncpa [#allocation3], 1
    %159 = vsyncpa [#allocation4], 1

</llo_original>
